<compile_context>
chip_gen: v7x
topology: tpu7x:2x2x1
jax: 0.10.0
libtpu: 0.0.40
codegen_flags: <defaults>
</compile_context>

<pallas_src>
import jax
import jax.numpy as jnp
from jax import lax
from jax.experimental import pallas as pl
from jax.experimental.pallas import tpu as pltpu

VOCAB = 1000
EMB = 64
NUM_FEATS = 2
H1, H2, OUT = 128, 64, 32
MAX_TILE = 512         # batch tile (M dim); sweepable 256-1024, multiple of 8


def _sianet_kernel(text_ref, num_ref, table_ref,
                   w1a_ref, w1b_ref, b1_ref,
                   w2_ref, b2_ref,
                   w3_ref, b3_ref,
                   out_ref):
    ids = text_ref[...]                           # (tile, S)   int32
    num = num_ref[...]                            # (tile, 2)   f32
    table = table_ref[...]                        # (VOCAB, EMB) f32, VMEM-resident

    tile, seq = ids.shape

    # --- EmbeddingBag(mode='mean') fused: one-hot token counts -> MXU matmul.
    # counts[b, v] = #{s : ids[b, s] == v};  counts @ table == sum_s table[ids[b, s]].
    vocab_iota = lax.broadcasted_iota(jnp.int32, (tile, VOCAB), 1)
    counts = jnp.zeros((tile, VOCAB), jnp.float32)
    for s in range(seq):                          # small static S, unrolled
        counts = counts + (ids[:, s:s + 1] == vocab_iota).astype(jnp.float32)
    pooled = jnp.dot(counts, table,
                     preferred_element_type=jnp.float32) * (1.0 / seq)

    # --- fc: Linear(66,128) + ReLU + Linear(128,64) + ReLU + Linear(64,32)
    # cat((pooled, num), 1) @ W1 == pooled @ W1[:EMB] + num @ W1[EMB:]
    # Pooled part on the MXU; the K=2 numeric part as a VPU broadcast FMA.
    h1 = jnp.dot(pooled, w1a_ref[...], preferred_element_type=jnp.float32)
    h1 = h1 + num[:, 0:1] * w1b_ref[0:1, :] + num[:, 1:2] * w1b_ref[1:2, :]
    h1 = jnp.maximum(h1 + b1_ref[...], 0.0)       # (tile, 128)

    h2 = jnp.dot(h1, w2_ref[...], preferred_element_type=jnp.float32) + b2_ref[...]
    h2 = jnp.maximum(h2, 0.0)                     # (tile, 64)

    out_ref[...] = (jnp.dot(h2, w3_ref[...], preferred_element_type=jnp.float32)
                    + b3_ref[...])                # (tile, 32), lane-masked store is free here


def _pick_tile(rows):
    """Largest batch tile <= MAX_TILE that still gives >= 2 grid steps (v7x)."""
    r8 = ((rows + 7) // 8) * 8
    if r8 < 16:
        return r8
    half = ((((r8 + 1) // 2) + 7) // 8) * 8       # ceil(r8/2) rounded up to 8
    return min(MAX_TILE, half)


def _fused_forward(text, num, params):
    """Run the fused gather+MLP over `rows` stacked examples."""
    rows, seq = text.shape
    tile = _pick_tile(rows)
    padded = pl.cdiv(rows, tile) * tile
    if padded != rows:
        text = jnp.pad(text, ((0, padded - rows), (0, 0)))
        num = jnp.pad(num, ((0, padded - rows), (0, 0)))

    grid = (padded // tile,)
    row_spec = lambda w: pl.BlockSpec((tile, w), lambda i: (i, 0))
    res_spec = lambda r, c: pl.BlockSpec((r, c), lambda i: (0, 0))  # VMEM-resident

    out = pl.pallas_call(
        _sianet_kernel,
        out_shape=jax.ShapeDtypeStruct((padded, OUT), jnp.float32),
        grid=grid,
        in_specs=[
            row_spec(seq),                  # token ids
            row_spec(NUM_FEATS),            # numeric features
            res_spec(VOCAB, EMB),           # embedding table (256 KB)
            res_spec(EMB, H1),              # w1a  (pooled part of Linear(66,128))
            res_spec(NUM_FEATS, H1),        # w1b  (numeric part)
            res_spec(1, H1),                # b1
            res_spec(H1, H2),               # w2
            res_spec(1, H2),                # b2
            res_spec(H2, OUT),              # w3
            res_spec(1, OUT),               # b3
        ],
        out_specs=row_spec(OUT),
        compiler_params=pltpu.CompilerParams(
            dimension_semantics=("parallel",),
            vmem_limit_bytes=32 * 1024 * 1024,
        ),
    )(text, num,
      params["embedding"],
      params["w1a"], params["w1b"], params["b1"],
      params["w2"], params["b2"],
      params["w3"], params["b3"])

    return out[:rows]


def sianet_forward(text1, num1, text2, num2, params):
    """Siamese forward: shared-weight TANet on both (text, numeric) pairs."""
    B = text1.shape[0]
    # Fuse both branches along batch -> one kernel launch, weights DMA'd once.
    text = jnp.concatenate([text1, text2], axis=0).astype(jnp.int32)   # (2B, S)
    num = jnp.concatenate([num1, num2], axis=0).astype(jnp.float32)    # (2B, 2)
    out = _fused_forward(text, num, params)                            # (2B, 32)
    return out[:B], out[B:]


def sianet_reference(text1, num1, text2, num2, params):
    """Pure-JAX reference of the PyTorch module (for correctness checking)."""
    w1 = jnp.concatenate([params["w1a"], params["w1b"]], axis=0)

    def branch(text, num):
        emb = jnp.mean(jnp.take(params["embedding"], text, axis=0), axis=1)
        x = jnp.concatenate([emb, num.astype(jnp.float32)], axis=1)
        hp = lax.Precision.HIGHEST
        h = jnp.maximum(jnp.dot(x, w1, precision=hp) + params["b1"], 0.0)
        h = jnp.maximum(jnp.dot(h, params["w2"], precision=hp) + params["b2"], 0.0)
        return jnp.dot(h, params["w3"], precision=hp) + params["b3"]

    return branch(text1, num1), branch(text2, num2)


def init_params(key):
    ks = jax.random.split(key, 4)

    def lin(k, fan_in, fan_out):
        bound = 1.0 / jnp.sqrt(fan_in)
        kw, kb = jax.random.split(k)
        w = jax.random.uniform(kw, (fan_in, fan_out), jnp.float32, -bound, bound)
        b = jax.random.uniform(kb, (1, fan_out), jnp.float32, -bound, bound)
        return w, b

    embedding = jax.random.normal(ks[0], (VOCAB, EMB), jnp.float32)
    w1, b1 = lin(ks[1], EMB + NUM_FEATS, H1)     # Linear(66, 128)
    w2, b2 = lin(ks[2], H1, H2)                  # Linear(128, 64)
    w3, b3 = lin(ks[3], H2, OUT)                 # Linear(64, 32)

    return {
        "embedding": embedding,
        "w1a": w1[:EMB, :],      # part multiplying pooled embedding
        "w1b": w1[EMB:, :],      # part multiplying numeric features
        "b1": b1,
        "w2": w2, "b2": b2,
        "w3": w3, "b3": b3,
    }


if __name__ == "__main__":
    key = jax.random.PRNGKey(0)
    kp, k1, k2, k3, k4 = jax.random.split(key, 5)
    params = init_params(kp)

    B, S = 2, 8
    text1 = jax.random.randint(k1, (B, S), 0, VOCAB, dtype=jnp.int32)
    text2 = jax.random.randint(k2, (B, S), 0, VOCAB, dtype=jnp.int32)
    num1 = jax.random.normal(k3, (B, NUM_FEATS), jnp.float32)
    num2 = jax.random.normal(k4, (B, NUM_FEATS), jnp.float32)

    out1, out2 = jax.jit(lambda a, b, c, d: sianet_forward(a, b, c, d, params))(
        text1, num1, text2, num2)
    jax.block_until_ready((out1, out2))

    assert out1.shape == (B, OUT) and out2.shape == (B, OUT)

    ref1, ref2 = sianet_reference(text1, num1, text2, num2, params)
    assert jnp.allclose(out1, ref1, rtol=2e-3, atol=2e-3)
    assert jnp.allclose(out2, ref2, rtol=2e-3, atol=2e-3)

    print("KERNEL_OK")
</pallas_src>

<mosaic_0001>
module attributes {stable_mosaic.version = 11 : i64} {
  func.func @_sianet_kernel(%arg0: i32, %arg1: memref<8x8xi32, #tpu.memory_space<vmem>>, %arg2: memref<8x2xf32, #tpu.memory_space<vmem>>, %arg3: memref<1000x64xf32, #tpu.memory_space<vmem>>, %arg4: memref<64x128xf32, #tpu.memory_space<vmem>>, %arg5: memref<2x128xf32, #tpu.memory_space<vmem>>, %arg6: memref<1x128xf32, #tpu.memory_space<vmem>>, %arg7: memref<128x64xf32, #tpu.memory_space<vmem>>, %arg8: memref<1x64xf32, #tpu.memory_space<vmem>>, %arg9: memref<64x32xf32, #tpu.memory_space<vmem>>, %arg10: memref<1x32xf32, #tpu.memory_space<vmem>>, %arg11: memref<8x32xf32, #tpu.memory_space<vmem>>) attributes {dimension_semantics = [#tpu.dimension_semantics<parallel>], iteration_bounds = array<i64: 1>, scalar_prefetch = 0 : i64, scratch_operands = 0 : i64, tpu.core_type = #tpu.core_type<tc>, window_params = [{transform_indices = @transform_0, window_bounds = array<i64: 8, 8>}, {transform_indices = @transform_1, window_bounds = array<i64: 8, 2>}, {pipeline_mode = #tpu.pipeline_mode<synchronous>, transform_indices = @transform_2, window_bounds = array<i64: 1000, 64>}, {pipeline_mode = #tpu.pipeline_mode<synchronous>, transform_indices = @transform_3, window_bounds = array<i64: 64, 128>}, {pipeline_mode = #tpu.pipeline_mode<synchronous>, transform_indices = @transform_4, window_bounds = array<i64: 2, 128>}, {pipeline_mode = #tpu.pipeline_mode<synchronous>, transform_indices = @transform_5, window_bounds = array<i64: 1, 128>}, {pipeline_mode = #tpu.pipeline_mode<synchronous>, transform_indices = @transform_6, window_bounds = array<i64: 128, 64>}, {pipeline_mode = #tpu.pipeline_mode<synchronous>, transform_indices = @transform_7, window_bounds = array<i64: 1, 64>}, {pipeline_mode = #tpu.pipeline_mode<synchronous>, transform_indices = @transform_8, window_bounds = array<i64: 64, 32>}, {pipeline_mode = #tpu.pipeline_mode<synchronous>, transform_indices = @transform_9, window_bounds = array<i64: 1, 32>}, {transform_indices = @transform_10, window_bounds = array<i64: 8, 32>}]} {
    %c0 = arith.constant 0 : index
    %c0_0 = arith.constant 0 : index
    %0 = vector.load %arg1[%c0, %c0_0] : memref<8x8xi32, #tpu.memory_space<vmem>>, vector<8x8xi32>
    %c0_1 = arith.constant 0 : index
    %c0_2 = arith.constant 0 : index
    %1 = vector.load %arg2[%c0_1, %c0_2] : memref<8x2xf32, #tpu.memory_space<vmem>>, vector<8x2xf32>
    %c0_3 = arith.constant 0 : index
    %c0_4 = arith.constant 0 : index
    %2 = vector.load %arg3[%c0_3, %c0_4] : memref<1000x64xf32, #tpu.memory_space<vmem>>, vector<1000x64xf32>
    %3 = tpu.iota {dimensions = array<i32: 1>} : vector<8x1000xi32>
    %cst = arith.constant 0.000000e+00 : f32
    %4 = vector.broadcast %cst : f32 to vector<8x1000xf32>
    %5 = vector.extract_strided_slice %0 {offsets = [0, 0], sizes = [8, 1], strides = [1, 1]} : vector<8x8xi32> to vector<8x1xi32>
    %6 = vector.broadcast %5 : vector<8x1xi32> to vector<8x1000xi32>
    %7 = arith.cmpi eq, %6, %3 : vector<8x1000xi32>
    %8 = arith.extui %7 : vector<8x1000xi1> to vector<8x1000xi32>
    %9 = arith.sitofp %8 : vector<8x1000xi32> to vector<8x1000xf32>
    %10 = arith.addf %4, %9 : vector<8x1000xf32>
    %11 = vector.extract_strided_slice %0 {offsets = [0, 1], sizes = [8, 1], strides = [1, 1]} : vector<8x8xi32> to vector<8x1xi32>
    %12 = vector.broadcast %11 : vector<8x1xi32> to vector<8x1000xi32>
    %13 = arith.cmpi eq, %12, %3 : vector<8x1000xi32>
    %14 = arith.extui %13 : vector<8x1000xi1> to vector<8x1000xi32>
    %15 = arith.sitofp %14 : vector<8x1000xi32> to vector<8x1000xf32>
    %16 = arith.addf %10, %15 : vector<8x1000xf32>
    %17 = vector.extract_strided_slice %0 {offsets = [0, 2], sizes = [8, 1], strides = [1, 1]} : vector<8x8xi32> to vector<8x1xi32>
    %18 = vector.broadcast %17 : vector<8x1xi32> to vector<8x1000xi32>
    %19 = arith.cmpi eq, %18, %3 : vector<8x1000xi32>
    %20 = arith.extui %19 : vector<8x1000xi1> to vector<8x1000xi32>
    %21 = arith.sitofp %20 : vector<8x1000xi32> to vector<8x1000xf32>
    %22 = arith.addf %16, %21 : vector<8x1000xf32>
    %23 = vector.extract_strided_slice %0 {offsets = [0, 3], sizes = [8, 1], strides = [1, 1]} : vector<8x8xi32> to vector<8x1xi32>
    %24 = vector.broadcast %23 : vector<8x1xi32> to vector<8x1000xi32>
    %25 = arith.cmpi eq, %24, %3 : vector<8x1000xi32>
    %26 = arith.extui %25 : vector<8x1000xi1> to vector<8x1000xi32>
    %27 = arith.sitofp %26 : vector<8x1000xi32> to vector<8x1000xf32>
    %28 = arith.addf %22, %27 : vector<8x1000xf32>
    %29 = vector.extract_strided_slice %0 {offsets = [0, 4], sizes = [8, 1], strides = [1, 1]} : vector<8x8xi32> to vector<8x1xi32>
    %30 = vector.broadcast %29 : vector<8x1xi32> to vector<8x1000xi32>
    %31 = arith.cmpi eq, %30, %3 : vector<8x1000xi32>
    %32 = arith.extui %31 : vector<8x1000xi1> to vector<8x1000xi32>
    %33 = arith.sitofp %32 : vector<8x1000xi32> to vector<8x1000xf32>
    %34 = arith.addf %28, %33 : vector<8x1000xf32>
    %35 = vector.extract_strided_slice %0 {offsets = [0, 5], sizes = [8, 1], strides = [1, 1]} : vector<8x8xi32> to vector<8x1xi32>
    %36 = vector.broadcast %35 : vector<8x1xi32> to vector<8x1000xi32>
    %37 = arith.cmpi eq, %36, %3 : vector<8x1000xi32>
    %38 = arith.extui %37 : vector<8x1000xi1> to vector<8x1000xi32>
    %39 = arith.sitofp %38 : vector<8x1000xi32> to vector<8x1000xf32>
    %40 = arith.addf %34, %39 : vector<8x1000xf32>
    %41 = vector.extract_strided_slice %0 {offsets = [0, 6], sizes = [8, 1], strides = [1, 1]} : vector<8x8xi32> to vector<8x1xi32>
    %42 = vector.broadcast %41 : vector<8x1xi32> to vector<8x1000xi32>
    %43 = arith.cmpi eq, %42, %3 : vector<8x1000xi32>
    %44 = arith.extui %43 : vector<8x1000xi1> to vector<8x1000xi32>
    %45 = arith.sitofp %44 : vector<8x1000xi32> to vector<8x1000xf32>
    %46 = arith.addf %40, %45 : vector<8x1000xf32>
    %47 = vector.extract_strided_slice %0 {offsets = [0, 7], sizes = [8, 1], strides = [1, 1]} : vector<8x8xi32> to vector<8x1xi32>
    %48 = vector.broadcast %47 : vector<8x1xi32> to vector<8x1000xi32>
    %49 = arith.cmpi eq, %48, %3 : vector<8x1000xi32>
    %50 = arith.extui %49 : vector<8x1000xi1> to vector<8x1000xi32>
    %51 = arith.sitofp %50 : vector<8x1000xi32> to vector<8x1000xf32>
    %52 = arith.addf %46, %51 : vector<8x1000xf32>
    %cst_5 = arith.constant dense<0.000000e+00> : vector<8x64xf32>
    %53 = tpu.matmul %52, %2, %cst_5 {dimension_numbers = #tpu.dot_dimension_numbers<[1], [0], [0], [1], [0, 0, 1, 1], [], []>} : vector<8x1000xf32>, vector<1000x64xf32>, vector<8x64xf32> -> vector<8x64xf32>
    %cst_6 = arith.constant 1.250000e-01 : f32
    %54 = vector.broadcast %cst_6 : f32 to vector<8x64xf32>
    %55 = arith.mulf %53, %54 : vector<8x64xf32>
    %c0_7 = arith.constant 0 : index
    %c0_8 = arith.constant 0 : index
    %56 = vector.load %arg4[%c0_7, %c0_8] : memref<64x128xf32, #tpu.memory_space<vmem>>, vector<64x128xf32>
    %cst_9 = arith.constant dense<0.000000e+00> : vector<8x128xf32>
    %57 = tpu.matmul %55, %56, %cst_9 {dimension_numbers = #tpu.dot_dimension_numbers<[1], [0], [0], [1], [0, 0, 1, 1], [], []>} : vector<8x64xf32>, vector<64x128xf32>, vector<8x128xf32> -> vector<8x128xf32>
    %58 = vector.extract_strided_slice %1 {offsets = [0, 0], sizes = [8, 1], strides = [1, 1]} : vector<8x2xf32> to vector<8x1xf32>
    %c0_10 = arith.constant 0 : index
    %c0_11 = arith.constant 0 : index
    %59 = vector.load %arg5[%c0_10, %c0_11] : memref<2x128xf32, #tpu.memory_space<vmem>>, vector<1x128xf32>
    %60 = vector.broadcast %58 : vector<8x1xf32> to vector<8x128xf32>
    %61 = vector.broadcast %59 : vector<1x128xf32> to vector<8x128xf32>
    %62 = arith.mulf %60, %61 : vector<8x128xf32>
    %63 = arith.addf %57, %62 : vector<8x128xf32>
    %64 = vector.extract_strided_slice %1 {offsets = [0, 1], sizes = [8, 1], strides = [1, 1]} : vector<8x2xf32> to vector<8x1xf32>
    %c1 = arith.constant 1 : index
    %c0_12 = arith.constant 0 : index
    %65 = vector.load %arg5[%c1, %c0_12] : memref<2x128xf32, #tpu.memory_space<vmem>>, vector<1x128xf32>
    %66 = vector.broadcast %64 : vector<8x1xf32> to vector<8x128xf32>
    %67 = vector.broadcast %65 : vector<1x128xf32> to vector<8x128xf32>
    %68 = arith.mulf %66, %67 : vector<8x128xf32>
    %69 = arith.addf %63, %68 : vector<8x128xf32>
    %c0_13 = arith.constant 0 : index
    %c0_14 = arith.constant 0 : index
    %70 = vector.load %arg6[%c0_13, %c0_14] : memref<1x128xf32, #tpu.memory_space<vmem>>, vector<1x128xf32>
    %71 = vector.broadcast %70 : vector<1x128xf32> to vector<8x128xf32>
    %72 = arith.addf %69, %71 : vector<8x128xf32>
    %cst_15 = arith.constant 0.000000e+00 : f32
    %73 = vector.broadcast %cst_15 : f32 to vector<8x128xf32>
    %74 = arith.maximumf %72, %73 : vector<8x128xf32>
    %c0_16 = arith.constant 0 : index
    %c0_17 = arith.constant 0 : index
    %75 = vector.load %arg7[%c0_16, %c0_17] : memref<128x64xf32, #tpu.memory_space<vmem>>, vector<128x64xf32>
    %cst_18 = arith.constant dense<0.000000e+00> : vector<8x64xf32>
    %76 = tpu.matmul %74, %75, %cst_18 {dimension_numbers = #tpu.dot_dimension_numbers<[1], [0], [0], [1], [0, 0, 1, 1], [], []>} : vector<8x128xf32>, vector<128x64xf32>, vector<8x64xf32> -> vector<8x64xf32>
    %c0_19 = arith.constant 0 : index
    %c0_20 = arith.constant 0 : index
    %77 = vector.load %arg8[%c0_19, %c0_20] : memref<1x64xf32, #tpu.memory_space<vmem>>, vector<1x64xf32>
    %78 = vector.broadcast %77 : vector<1x64xf32> to vector<8x64xf32>
    %79 = arith.addf %76, %78 : vector<8x64xf32>
    %cst_21 = arith.constant 0.000000e+00 : f32
    %80 = vector.broadcast %cst_21 : f32 to vector<8x64xf32>
    %81 = arith.maximumf %79, %80 : vector<8x64xf32>
    %c0_22 = arith.constant 0 : index
    %c0_23 = arith.constant 0 : index
    %82 = vector.load %arg9[%c0_22, %c0_23] : memref<64x32xf32, #tpu.memory_space<vmem>>, vector<64x32xf32>
    %cst_24 = arith.constant dense<0.000000e+00> : vector<8x32xf32>
    %83 = tpu.matmul %81, %82, %cst_24 {dimension_numbers = #tpu.dot_dimension_numbers<[1], [0], [0], [1], [0, 0, 1, 1], [], []>} : vector<8x64xf32>, vector<64x32xf32>, vector<8x32xf32> -> vector<8x32xf32>
    %c0_25 = arith.constant 0 : index
    %c0_26 = arith.constant 0 : index
    %84 = vector.load %arg10[%c0_25, %c0_26] : memref<1x32xf32, #tpu.memory_space<vmem>>, vector<1x32xf32>
    %85 = vector.broadcast %84 : vector<1x32xf32> to vector<8x32xf32>
    %86 = arith.addf %83, %85 : vector<8x32xf32>
    %c0_27 = arith.constant 0 : index
    %c0_28 = arith.constant 0 : index
    %87 = vector.load %arg11[%c0_27, %c0_28] : memref<8x32xf32, #tpu.memory_space<vmem>>, vector<8x32xf32>
    tpu.vector_store %arg11[%c0_27, %c0_28], %86 {strides = array<i32>} : memref<8x32xf32, #tpu.memory_space<vmem>>, vector<8x32xf32>,
    return
  }
  func.func @transform_0(%arg0: i32) -> (i32, i32) {
    %c0_i32 = arith.constant 0 : i32
    %c0_i32_0 = arith.constant 0 : i32
    return %arg0, %c0_i32 : i32, i32
  }
  func.func @transform_1(%arg0: i32) -> (i32, i32) {
    %c0_i32 = arith.constant 0 : i32
    %c0_i32_0 = arith.constant 0 : i32
    return %arg0, %c0_i32 : i32, i32
  }
  func.func @transform_2(%arg0: i32) -> (i32, i32) {
    %c0_i32 = arith.constant 0 : i32
    %c0_i32_0 = arith.constant 0 : i32
    %c0_i32_1 = arith.constant 0 : i32
    return %c0_i32, %c0_i32_0 : i32, i32
  }
  func.func @transform_3(%arg0: i32) -> (i32, i32) {
    %c0_i32 = arith.constant 0 : i32
    %c0_i32_0 = arith.constant 0 : i32
    %c0_i32_1 = arith.constant 0 : i32
    return %c0_i32, %c0_i32_0 : i32, i32
  }
  func.func @transform_4(%arg0: i32) -> (i32, i32) {
    %c0_i32 = arith.constant 0 : i32
    %c0_i32_0 = arith.constant 0 : i32
    %c0_i32_1 = arith.constant 0 : i32
    return %c0_i32, %c0_i32_0 : i32, i32
  }
  func.func @transform_5(%arg0: i32) -> (i32, i32) {
    %c0_i32 = arith.constant 0 : i32
    %c0_i32_0 = arith.constant 0 : i32
    %c0_i32_1 = arith.constant 0 : i32
    return %c0_i32, %c0_i32_0 : i32, i32
  }
  func.func @transform_6(%arg0: i32) -> (i32, i32) {
    %c0_i32 = arith.constant 0 : i32
    %c0_i32_0 = arith.constant 0 : i32
    %c0_i32_1 = arith.constant 0 : i32
    return %c0_i32, %c0_i32_0 : i32, i32
  }
  func.func @transform_7(%arg0: i32) -> (i32, i32) {
    %c0_i32 = arith.constant 0 : i32
    %c0_i32_0 = arith.constant 0 : i32
    %c0_i32_1 = arith.constant 0 : i32
    return %c0_i32, %c0_i32_0 : i32, i32
  }
  func.func @transform_8(%arg0: i32) -> (i32, i32) {
    %c0_i32 = arith.constant 0 : i32
    %c0_i32_0 = arith.constant 0 : i32
    %c0_i32_1 = arith.constant 0 : i32
    return %c0_i32, %c0_i32_0 : i32, i32
  }
  func.func @transform_9(%arg0: i32) -> (i32, i32) {
    %c0_i32 = arith.constant 0 : i32
    %c0_i32_0 = arith.constant 0 : i32
    %c0_i32_1 = arith.constant 0 : i32
    return %c0_i32, %c0_i32_0 : i32, i32
  }
  func.func @transform_10(%arg0: i32) -> (i32, i32) {
    %c0_i32 = arith.constant 0 : i32
    %c0_i32_0 = arith.constant 0 : i32
    return %arg0, %c0_i32 : i32, i32
  }
}

</mosaic_0001>

<llo_original>
// kernel: _lambda_.1
$region0: #{_lambda_.1}
  #allocation0 [shape = 'u32[]', space=smem, size = 0x4, offset = 0x4, fixed_abs, tag = 'smem constant byte address 0x4 - core index']
  #allocation1 [shape = 'u32[144,128]{1,0:T(1,128)}', space=vmem, size = 0x12000, scoped, tag = 'internal scratch']
  %s0 = inlined_call_operand.vmem [shape: s32[8,8], index: 0, kind: input, shape index: {}]
  %s1 = inlined_call_operand.vmem [shape: f32[8,2], index: 1, kind: input, shape index: {}]
  %s2 = inlined_call_operand.hbm [shape: f32[1000,64], index: 2, kind: input, shape index: {}]
  %s3 = inlined_call_operand.hbm [shape: f32[64,128], index: 3, kind: input, shape index: {}]
  %s4 = inlined_call_operand.vmem [shape: f32[2,128], index: 4, kind: input, shape index: {}]
  %s5 = inlined_call_operand.vmem [shape: f32[1,128], index: 5, kind: input, shape index: {}]
  %s6 = inlined_call_operand.hbm [shape: f32[128,64], index: 6, kind: input, shape index: {}]
  %s7 = inlined_call_operand.vmem [shape: f32[1,64], index: 7, kind: input, shape index: {}]
  %s8 = inlined_call_operand.vmem [shape: f32[64,32], index: 8, kind: input, shape index: {}]
  %s9 = inlined_call_operand.vmem [shape: f32[1,32], index: 9, kind: input, shape index: {}]
  %s10 = inlined_call_operand.vmem [shape: f32[8,32], index: 10, kind: output, shape index: {}]
  %s11 = sld [smem:[#allocation0]]
  $region62: #{_lambda_.1} parent=0
    _
  %s13 = ssub.s32 1, %s11
  %s14 = scalar_select 0, %s13, %s11
  $region1: #{_lambda_.1} parent=0
    #allocation2 [shape = 'u8[512000]{0}', space=vmem, size = 0x7d000, scoped, tag = 'input window, operand 2, single buffered']
    #allocation3 [shape = 's32[1]{0}', space=sflag, size = 0x4, scoped, tag = 'scoped memory for _lambda_.1']
    #allocation4 [shape = 'u8[32768]{0}', space=vmem, size = 0x8000, scoped, tag = 'input window, operand 3, single buffered']
    #allocation5 [shape = 's32[1]{0}', space=sflag, size = 0x4, scoped, tag = 'scoped memory for _lambda_.1']
    #allocation6 [shape = 'u8[65536]{0}', space=vmem, size = 0x10000, scoped, tag = 'input window, operand 6, single buffered']
    %15 = vsyncpa [#allocation3], 0
    %16 = vsyncpa [#allocation5], 0
    // Predicated region
    $region2: #{_lambda_.1} parent=1 // pred_check
      _
    $region3: #{_lambda_.1} parent=1 // pred_check_branch
      %18 = sbr.rel (0) target = $region5
    $region4: #{_lambda_.1} parent=1 // pred_region
      _
    $region5: #{_lambda_.1} parent=1 // pred_fallthru
      _
    // Predicated region
    $region6: #{_lambda_.1} parent=1 // pred_check
      _
    $region7: #{_lambda_.1} parent=1 // pred_check_branch
      %20 = sbr.rel (0) target = $region9
    $region8: #{_lambda_.1} parent=1 // pred_region
      _
    $region9: #{_lambda_.1} parent=1 // pred_fallthru
      _
    // Predicated region
    $region10: #{_lambda_.1} parent=1 // pred_check
      _
    $region11: #{_lambda_.1} parent=1 // pred_check_branch
      %22 = sbr.rel (0) target = $region13
    $region12: #{_lambda_.1} parent=1 // pred_region
      %s24 = ssub.s32 16000, 16000
      %25 = vsyncadd [#allocation3], %s24
      %s26 = sshll.u32 [#allocation2], 4
      %s27 = int_to_ptr.vmem [resolvable:$true] %s26
      %32 = dma.hbm_to_vmem [thread:$0]  %s2, 16000, %s27, [#allocation3], 128, 128, 8
    $region13: #{_lambda_.1} parent=1 // pred_fallthru
      _
    // Predicated region
    $region14: #{_lambda_.1} parent=1 // pred_check
      _
    $region15: #{_lambda_.1} parent=1 // pred_check_branch
      %34 = sbr.rel (0) target = $region17
    $region16: #{_lambda_.1} parent=1 // pred_region
      %s36 = ssub.s32 1024, 1024
      %37 = vsyncadd [#allocation5], %s36
      %s38 = sshll.u32 [#allocation4], 4
      %s39 = int_to_ptr.vmem [resolvable:$true] %s38
      %44 = dma.hbm_to_vmem [thread:$0]  %s3, 1024, %s39, [#allocation5], 128, 128, 8
    $region17: #{_lambda_.1} parent=1 // pred_fallthru
      _
    // Predicated region
    $region18: #{_lambda_.1} parent=1 // pred_check
      _
    $region19: #{_lambda_.1} parent=1 // pred_check_branch
      %46 = sbr.rel (0) target = $region21
    $region20: #{_lambda_.1} parent=1 // pred_region
      _
    $region21: #{_lambda_.1} parent=1 // pred_fallthru
      _
    // Predicated region
    $region22: #{_lambda_.1} parent=1 // pred_check
      _
    $region23: #{_lambda_.1} parent=1 // pred_check_branch
      %48 = sbr.rel (0) target = $region25
    $region24: #{_lambda_.1} parent=1 // pred_region
      _
    $region25: #{_lambda_.1} parent=1 // pred_fallthru
      _
    // Predicated region
    $region26: #{_lambda_.1} parent=1 // pred_check
      _
    $region27: #{_lambda_.1} parent=1 // pred_check_branch
      %50 = sbr.rel (0) target = $region29
    $region28: #{_lambda_.1} parent=1 // pred_region
      %s52 = ssub.s32 2048, 2048
      %53 = vsyncadd [#allocation5], %s52
      %s54 = sshll.u32 [#allocation6], 4
      %s55 = int_to_ptr.vmem [resolvable:$true] %s54
      %60 = dma.hbm_to_vmem [thread:$0]  %s6, 2048, %s55, [#allocation5], 128, 128, 8
    $region29: #{_lambda_.1} parent=1 // pred_fallthru
      _
    // Predicated region
    $region30: #{_lambda_.1} parent=1 // pred_check
      _
    $region31: #{_lambda_.1} parent=1 // pred_check_branch
      %62 = sbr.rel (0) target = $region33
    $region32: #{_lambda_.1} parent=1 // pred_region
      _
    $region33: #{_lambda_.1} parent=1 // pred_fallthru
      _
    // Predicated region
    $region34: #{_lambda_.1} parent=1 // pred_check
      _
    $region35: #{_lambda_.1} parent=1 // pred_check_branch
      %64 = sbr.rel (0) target = $region37
    $region36: #{_lambda_.1} parent=1 // pred_region
      _
    $region37: #{_lambda_.1} parent=1 // pred_fallthru
      _
    // Predicated region
    $region38: #{_lambda_.1} parent=1 // pred_check
      _
    $region39: #{_lambda_.1} parent=1 // pred_check_branch
      %66 = sbr.rel (0) target = $region41
    $region40: #{_lambda_.1} parent=1 // pred_region
      _
    $region41: #{_lambda_.1} parent=1 // pred_fallthru
      _
    // Predicated region
    $region42: #{_lambda_.1} parent=1 // pred_check
      _
    $region43: #{_lambda_.1} parent=1 // pred_check_branch
      %68 = sbr.rel (0) target = $region45
    $region44: #{_lambda_.1} parent=1 // pred_region
      %69 = dma.done [#allocation3], 16000
    $region45: #{_lambda_.1} parent=1 // pred_fallthru
      _
    // Predicated region
    $region46: #{_lambda_.1} parent=1 // pred_check
      _
    $region47: #{_lambda_.1} parent=1 // pred_check_branch
      %71 = sbr.rel (0) target = $region49
    $region48: #{_lambda_.1} parent=1 // pred_region
      %72 = dma.done [#allocation5], 1024
    $region49: #{_lambda_.1} parent=1 // pred_fallthru
      _
    // Predicated region
    $region50: #{_lambda_.1} parent=1 // pred_check
      _
    $region51: #{_lambda_.1} parent=1 // pred_check_branch
      %74 = sbr.rel (0) target = $region53
    $region52: #{_lambda_.1} parent=1 // pred_region
      %75 = dma.done [#allocation5], 2048
    $region53: #{_lambda_.1} parent=1 // pred_fallthru
      _
    %v76 = vld [vmem:[%s0] sm:$0xff]
    %v77 = vld [vmem:[%s1] sm:$0xff]
    %v78 = vld [vmem:[#allocation2] sm:$0xff]
    %v79 = vld [vmem:[#allocation2 + $0x8] sm:$0xff]
    %v80 = vld [vmem:[#allocation2 + $0x10] sm:$0xff]
    %v81 = vld [vmem:[#allocation2 + $0x18] sm:$0xff]
    %v82 = vld [vmem:[#allocation2 + $0x20] sm:$0xff]
    %v83 = vld [vmem:[#allocation2 + $0x28] sm:$0xff]
    %v84 = vld [vmem:[#allocation2 + $0x30] sm:$0xff]
    %v85 = vld [vmem:[#allocation2 + $0x38] sm:$0xff]
    %v86 = vld [vmem:[#allocation2 + $0x40] sm:$0xff]
    %v87 = vld [vmem:[#allocation2 + $0x48] sm:$0xff]
    %v88 = vld [vmem:[#allocation2 + $0x50] sm:$0xff]
    %v89 = vld [vmem:[#allocation2 + $0x58] sm:$0xff]
    %v90 = vld [vmem:[#allocation2 + $0x60] sm:$0xff]
    %v91 = vld [vmem:[#allocation2 + $0x68] sm:$0xff]
    %v92 = vld [vmem:[#allocation2 + $0x70] sm:$0xff]
    %v93 = vld [vmem:[#allocation2 + $0x78] sm:$0xff]
    %v94 = vld [vmem:[#allocation2 + $0x80] sm:$0xff]
    %v95 = vld [vmem:[#allocation2 + $0x88] sm:$0xff]
    %v96 = vld [vmem:[#allocation2 + $0x90] sm:$0xff]
    %v97 = vld [vmem:[#allocation2 + $0x98] sm:$0xff]
    %v98 = vld [vmem:[#allocation2 + $0xa0] sm:$0xff]
    %v99 = vld [vmem:[#allocation2 + $0xa8] sm:$0xff]
    %v100 = vld [vmem:[#allocation2 + $0xb0] sm:$0xff]
    %v101 = vld [vmem:[#allocation2 + $0xb8] sm:$0xff]
    %v102 = vld [vmem:[#allocation2 + $0xc0] sm:$0xff]
    %v103 = vld [vmem:[#allocation2 + $0xc8] sm:$0xff]
    %v104 = vld [vmem:[#allocation2 + $0xd0] sm:$0xff]
    %v105 = vld [vmem:[#allocation2 + $0xd8] sm:$0xff]
    %v106 = vld [vmem:[#allocation2 + $0xe0] sm:$0xff]
    %v107 = vld [vmem:[#allocation2 + $0xe8] sm:$0xff]
    %v108 = vld [vmem:[#allocation2 + $0xf0] sm:$0xff]
    %v109 = vld [vmem:[#allocation2 + $0xf8] sm:$0xff]
    %v110 = vld [vmem:[#allocation2 + $0x100] sm:$0xff]
    %v111 = vld [vmem:[#allocation2 + $0x108] sm:$0xff]
    %v112 = vld [vmem:[#allocation2 + $0x110] sm:$0xff]
    %v113 = vld [vmem:[#allocation2 + $0x118] sm:$0xff]
    %v114 = vld [vmem:[#allocation2 + $0x120] sm:$0xff]
    %v115 = vld [vmem:[#allocation2 + $0x128] sm:$0xff]
    %v116 = vld [vmem:[#allocation2 + $0x130] sm:$0xff]
    %v117 = vld [vmem:[#allocation2 + $0x138] sm:$0xff]
    %v118 = vld [vmem:[#allocation2 + $0x140] sm:$0xff]
    %v119 = vld [vmem:[#allocation2 + $0x148] sm:$0xff]
    %v120 = vld [vmem:[#allocation2 + $0x150] sm:$0xff]
    %v121 = vld [vmem:[#allocation2 + $0x158] sm:$0xff]
    %v122 = vld [vmem:[#allocation2 + $0x160] sm:$0xff]
    %v123 = vld [vmem:[#allocation2 + $0x168] sm:$0xff]
    %v124 = vld [vmem:[#allocation2 + $0x170] sm:$0xff]
    %v125 = vld [vmem:[#allocation2 + $0x178] sm:$0xff]
    %v126 = vld [vmem:[#allocation2 + $0x180] sm:$0xff]
    %v127 = vld [vmem:[#allocation2 + $0x188] sm:$0xff]
    %v128 = vld [vmem:[#allocation2 + $0x190] sm:$0xff]
    %v129 = vld [vmem:[#allocation2 + $0x198] sm:$0xff]
    %v130 = vld [vmem:[#allocation2 + $0x1a0] sm:$0xff]
    %v131 = vld [vmem:[#allocation2 + $0x1a8] sm:$0xff]
    %v132 = vld [vmem:[#allocation2 + $0x1b0] sm:$0xff]
    %v133 = vld [vmem:[#allocation2 + $0x1b8] sm:$0xff]
    %v134 = vld [vmem:[#allocation2 + $0x1c0] sm:$0xff]
    %v135 = vld [vmem:[#allocation2 + $0x1c8] sm:$0xff]
    %v136 = vld [vmem:[#allocation2 + $0x1d0] sm:$0xff]
    %v137 = vld [vmem:[#allocation2 + $0x1d8] sm:$0xff]
    %v138 = vld [vmem:[#allocation2 + $0x1e0] sm:$0xff]
    %v139 = vld [vmem:[#allocation2 + $0x1e8] sm:$0xff]
    %v140 = vld [vmem:[#allocation2 + $0x1f0] sm:$0xff]
    %v141 = vld [vmem:[#allocation2 + $0x1f8] sm:$0xff]
    %v142 = vld [vmem:[#allocation2 + $0x200] sm:$0xff]
    %v143 = vld [vmem:[#allocation2 + $0x208] sm:$0xff]
    %v144 = vld [vmem:[#allocation2 + $0x210] sm:$0xff]
    %v145 = vld [vmem:[#allocation2 + $0x218] sm:$0xff]
    %v146 = vld [vmem:[#allocation2 + $0x220] sm:$0xff]
    %v147 = vld [vmem:[#allocation2 + $0x228] sm:$0xff]
    %v148 = vld [vmem:[#allocation2 + $0x230] sm:$0xff]
    %v149 = vld [vmem:[#allocation2 + $0x238] sm:$0xff]
    %v150 = vld [vmem:[#allocation2 + $0x240] sm:$0xff]
    %v151 = vld [vmem:[#allocation2 + $0x248] sm:$0xff]
    %v152 = vld [vmem:[#allocation2 + $0x250] sm:$0xff]
    %v153 = vld [vmem:[#allocation2 + $0x258] sm:$0xff]
    %v154 = vld [vmem:[#allocation2 + $0x260] sm:$0xff]
    %v155 = vld [vmem:[#allocation2 + $0x268] sm:$0xff]
    %v156 = vld [vmem:[#allocation2 + $0x270] sm:$0xff]
    %v157 = vld [vmem:[#allocation2 + $0x278] sm:$0xff]
    %v158 = vld [vmem:[#allocation2 + $0x280] sm:$0xff]
    %v159 = vld [vmem:[#allocation2 + $0x288] sm:$0xff]
    %v160 = vld [vmem:[#allocation2 + $0x290] sm:$0xff]
    %v161 = vld [vmem:[#allocation2 + $0x298] sm:$0xff]
    %v162 = vld [vmem:[#allocation2 + $0x2a0] sm:$0xff]
    %v163 = vld [vmem:[#allocation2 + $0x2a8] sm:$0xff]
    %v164 = vld [vmem:[#allocation2 + $0x2b0] sm:$0xff]
    %v165 = vld [vmem:[#allocation2 + $0x2b8] sm:$0xff]
    %v166 = vld [vmem:[#allocation2 + $0x2c0] sm:$0xff]
    %v167 = vld [vmem:[#allocation2 + $0x2c8] sm:$0xff]
    %v168 = vld [vmem:[#allocation2 + $0x2d0] sm:$0xff]
    %v169 = vld [vmem:[#allocation2 + $0x2d8] sm:$0xff]
    %v170 = vld [vmem:[#allocation2 + $0x2e0] sm:$0xff]
    %v171 = vld [vmem:[#allocation2 + $0x2e8] sm:$0xff]
    %v172 = vld [vmem:[#allocation2 + $0x2f0] sm:$0xff]
    %v173 = vld [vmem:[#allocation2 + $0x2f8] sm:$0xff]
    %v174 = vld [vmem:[#allocation2 + $0x300] sm:$0xff]
    %v175 = vld [vmem:[#allocation2 + $0x308] sm:$0xff]
    %v176 = vld [vmem:[#allocation2 + $0x310] sm:$0xff]
    %v177 = vld [vmem:[#allocation2 + $0x318] sm:$0xff]
    %v178 = vld [vmem:[#allocation2 + $0x320] sm:$0xff]
    %v179 = vld [vmem:[#allocation2 + $0x328] sm:$0xff]
    %v180 = vld [vmem:[#allocation2 + $0x330] sm:$0xff]
    %v181 = vld [vmem:[#allocation2 + $0x338] sm:$0xff]
    %v182 = vld [vmem:[#allocation2 + $0x340] sm:$0xff]
    %v183 = vld [vmem:[#allocation2 + $0x348] sm:$0xff]
    %v184 = vld [vmem:[#allocation2 + $0x350] sm:$0xff]
    %v185 = vld [vmem:[#allocation2 + $0x358] sm:$0xff]
    %v186 = vld [vmem:[#allocation2 + $0x360] sm:$0xff]
    %v187 = vld [vmem:[#allocation2 + $0x368] sm:$0xff]
    %v188 = vld [vmem:[#allocation2 + $0x370] sm:$0xff]
    %v189 = vld [vmem:[#allocation2 + $0x378] sm:$0xff]
    %v190 = vld [vmem:[#allocation2 + $0x380] sm:$0xff]
    %v191 = vld [vmem:[#allocation2 + $0x388] sm:$0xff]
    %v192 = vld [vmem:[#allocation2 + $0x390] sm:$0xff]
    %v193 = vld [vmem:[#allocation2 + $0x398] sm:$0xff]
    %v194 = vld [vmem:[#allocation2 + $0x3a0] sm:$0xff]
    %v195 = vld [vmem:[#allocation2 + $0x3a8] sm:$0xff]
    %v196 = vld [vmem:[#allocation2 + $0x3b0] sm:$0xff]
    %v197 = vld [vmem:[#allocation2 + $0x3b8] sm:$0xff]
    %v198 = vld [vmem:[#allocation2 + $0x3c0] sm:$0xff]
    %v199 = vld [vmem:[#allocation2 + $0x3c8] sm:$0xff]
    %v200 = vld [vmem:[#allocation2 + $0x3d0] sm:$0xff]
    %v201 = vld [vmem:[#allocation2 + $0x3d8] sm:$0xff]
    %v202 = vld [vmem:[#allocation2 + $0x3e0] sm:$0xff]
    %v203 = vlaneseq
    %v204 = vand.u32 %v203, 127
    %v205 = vadd.s32 %v204, 128
    %v206 = vadd.s32 %v204, 256
    %v207 = vadd.s32 %v204, 384
    %v208 = vadd.s32 %v204, 512
    %v209 = vadd.s32 %v204, 640
    %v210 = vadd.s32 %v204, 768
    %v211 = vadd.s32 %v204, 896
    %212 = vset.pattern.permute.xlu0 0
    %213 = vperm.xlu0 %212, %v76
    %v214 = vpop.permute.xlu0 %213
    %vm215 = vcmp.eq.s32.totalorder %v214, %v204
    %vm216 = vcmp.eq.s32.totalorder %v214, %v205
    %vm217 = vcmp.eq.s32.totalorder %v214, %v206
    %vm218 = vcmp.eq.s32.totalorder %v214, %v207
    %vm219 = vcmp.eq.s32.totalorder %v214, %v208
    %vm220 = vcmp.eq.s32.totalorder %v214, %v209
    %vm221 = vcmp.eq.s32.totalorder %v214, %v210
    %vm222 = vcmp.eq.s32.totalorder %v214, %v211
    %v223 = vsel %vm215, 1, 0
    %v224 = vsel %vm216, 1, 0
    %v225 = vsel %vm217, 1, 0
    %v226 = vsel %vm218, 1, 0
    %v227 = vsel %vm219, 1, 0
    %v228 = vsel %vm220, 1, 0
    %v229 = vsel %vm221, 1, 0
    %v230 = vsel %vm222, 1, 0
    %v231 = vcvt.s32.f32 %v223
    %v232 = vcvt.s32.f32 %v224
    %v233 = vcvt.s32.f32 %v225
    %v234 = vcvt.s32.f32 %v226
    %v235 = vcvt.s32.f32 %v227
    %v236 = vcvt.s32.f32 %v228
    %v237 = vcvt.s32.f32 %v229
    %v238 = vcvt.s32.f32 %v230
    %v239 = vadd.f32 %v231, 0.0
    %v240 = vadd.f32 %v232, 0.0
    %v241 = vadd.f32 %v233, 0.0
    %v242 = vadd.f32 %v234, 0.0
    %v243 = vadd.f32 %v235, 0.0
    %v244 = vadd.f32 %v236, 0.0
    %v245 = vadd.f32 %v237, 0.0
    %v246 = vadd.f32 %v238, 0.0
    %247 = vset.pattern.permute.xlu0 1
    %248 = vperm.xlu0 %247, %v76
    %v249 = vpop.permute.xlu0 %248
    %vm250 = vcmp.eq.s32.totalorder %v249, %v204
    %vm251 = vcmp.eq.s32.totalorder %v249, %v205
    %vm252 = vcmp.eq.s32.totalorder %v249, %v206
    %vm253 = vcmp.eq.s32.totalorder %v249, %v207
    %vm254 = vcmp.eq.s32.totalorder %v249, %v208
    %vm255 = vcmp.eq.s32.totalorder %v249, %v209
    %vm256 = vcmp.eq.s32.totalorder %v249, %v210
    %vm257 = vcmp.eq.s32.totalorder %v249, %v211
    %v258 = vsel %vm250, 1, 0
    %v259 = vsel %vm251, 1, 0
    %v260 = vsel %vm252, 1, 0
    %v261 = vsel %vm253, 1, 0
    %v262 = vsel %vm254, 1, 0
    %v263 = vsel %vm255, 1, 0
    %v264 = vsel %vm256, 1, 0
    %v265 = vsel %vm257, 1, 0
    %v266 = vcvt.s32.f32 %v258
    %v267 = vcvt.s32.f32 %v259
    %v268 = vcvt.s32.f32 %v260
    %v269 = vcvt.s32.f32 %v261
    %v270 = vcvt.s32.f32 %v262
    %v271 = vcvt.s32.f32 %v263
    %v272 = vcvt.s32.f32 %v264
    %v273 = vcvt.s32.f32 %v265
    %v274 = vadd.f32 %v239, %v266
    %v275 = vadd.f32 %v240, %v267
    %v276 = vadd.f32 %v241, %v268
    %v277 = vadd.f32 %v242, %v269
    %v278 = vadd.f32 %v243, %v270
    %v279 = vadd.f32 %v244, %v271
    %v280 = vadd.f32 %v245, %v272
    %v281 = vadd.f32 %v246, %v273
    %282 = vset.pattern.permute.xlu0 2
    %283 = vperm.xlu0 %282, %v76
    %v284 = vpop.permute.xlu0 %283
    %vm285 = vcmp.eq.s32.totalorder %v284, %v204
    %vm286 = vcmp.eq.s32.totalorder %v284, %v205
    %vm287 = vcmp.eq.s32.totalorder %v284, %v206
    %vm288 = vcmp.eq.s32.totalorder %v284, %v207
    %vm289 = vcmp.eq.s32.totalorder %v284, %v208
    %vm290 = vcmp.eq.s32.totalorder %v284, %v209
    %vm291 = vcmp.eq.s32.totalorder %v284, %v210
    %vm292 = vcmp.eq.s32.totalorder %v284, %v211
    %v293 = vsel %vm285, 1, 0
    %v294 = vsel %vm286, 1, 0
    %v295 = vsel %vm287, 1, 0
    %v296 = vsel %vm288, 1, 0
    %v297 = vsel %vm289, 1, 0
    %v298 = vsel %vm290, 1, 0
    %v299 = vsel %vm291, 1, 0
    %v300 = vsel %vm292, 1, 0
    %v301 = vcvt.s32.f32 %v293
    %v302 = vcvt.s32.f32 %v294
    %v303 = vcvt.s32.f32 %v295
    %v304 = vcvt.s32.f32 %v296
    %v305 = vcvt.s32.f32 %v297
    %v306 = vcvt.s32.f32 %v298
    %v307 = vcvt.s32.f32 %v299
    %v308 = vcvt.s32.f32 %v300
    %v309 = vadd.f32 %v274, %v301
    %v310 = vadd.f32 %v275, %v302
    %v311 = vadd.f32 %v276, %v303
    %v312 = vadd.f32 %v277, %v304
    %v313 = vadd.f32 %v278, %v305
    %v314 = vadd.f32 %v279, %v306
    %v315 = vadd.f32 %v280, %v307
    %v316 = vadd.f32 %v281, %v308
    %317 = vset.pattern.permute.xlu0 3
    %318 = vperm.xlu0 %317, %v76
    %v319 = vpop.permute.xlu0 %318
    %vm320 = vcmp.eq.s32.totalorder %v319, %v204
    %vm321 = vcmp.eq.s32.totalorder %v319, %v205
    %vm322 = vcmp.eq.s32.totalorder %v319, %v206
    %vm323 = vcmp.eq.s32.totalorder %v319, %v207
    %vm324 = vcmp.eq.s32.totalorder %v319, %v208
    %vm325 = vcmp.eq.s32.totalorder %v319, %v209
    %vm326 = vcmp.eq.s32.totalorder %v319, %v210
    %vm327 = vcmp.eq.s32.totalorder %v319, %v211
    %v328 = vsel %vm320, 1, 0
    %v329 = vsel %vm321, 1, 0
    %v330 = vsel %vm322, 1, 0
    %v331 = vsel %vm323, 1, 0
    %v332 = vsel %vm324, 1, 0
    %v333 = vsel %vm325, 1, 0
    %v334 = vsel %vm326, 1, 0
    %v335 = vsel %vm327, 1, 0
    %v336 = vcvt.s32.f32 %v328
    %v337 = vcvt.s32.f32 %v329
    %v338 = vcvt.s32.f32 %v330
    %v339 = vcvt.s32.f32 %v331
    %v340 = vcvt.s32.f32 %v332
    %v341 = vcvt.s32.f32 %v333
    %v342 = vcvt.s32.f32 %v334
    %v343 = vcvt.s32.f32 %v335
    %v344 = vadd.f32 %v309, %v336
    %v345 = vadd.f32 %v310, %v337
    %v346 = vadd.f32 %v311, %v338
    %v347 = vadd.f32 %v312, %v339
    %v348 = vadd.f32 %v313, %v340
    %v349 = vadd.f32 %v314, %v341
    %v350 = vadd.f32 %v315, %v342
    %v351 = vadd.f32 %v316, %v343
    %352 = vset.pattern.permute.xlu0 4
    %353 = vperm.xlu0 %352, %v76
    %v354 = vpop.permute.xlu0 %353
    %vm355 = vcmp.eq.s32.totalorder %v354, %v204
    %vm356 = vcmp.eq.s32.totalorder %v354, %v205
    %vm357 = vcmp.eq.s32.totalorder %v354, %v206
    %vm358 = vcmp.eq.s32.totalorder %v354, %v207
    %vm359 = vcmp.eq.s32.totalorder %v354, %v208
    %vm360 = vcmp.eq.s32.totalorder %v354, %v209
    %vm361 = vcmp.eq.s32.totalorder %v354, %v210
    %vm362 = vcmp.eq.s32.totalorder %v354, %v211
    %v363 = vsel %vm355, 1, 0
    %v364 = vsel %vm356, 1, 0
    %v365 = vsel %vm357, 1, 0
    %v366 = vsel %vm358, 1, 0
    %v367 = vsel %vm359, 1, 0
    %v368 = vsel %vm360, 1, 0
    %v369 = vsel %vm361, 1, 0
    %v370 = vsel %vm362, 1, 0
    %v371 = vcvt.s32.f32 %v363
    %v372 = vcvt.s32.f32 %v364
    %v373 = vcvt.s32.f32 %v365
    %v374 = vcvt.s32.f32 %v366
    %v375 = vcvt.s32.f32 %v367
    %v376 = vcvt.s32.f32 %v368
    %v377 = vcvt.s32.f32 %v369
    %v378 = vcvt.s32.f32 %v370
    %v379 = vadd.f32 %v344, %v371
    %v380 = vadd.f32 %v345, %v372
    %v381 = vadd.f32 %v346, %v373
    %v382 = vadd.f32 %v347, %v374
    %v383 = vadd.f32 %v348, %v375
    %v384 = vadd.f32 %v349, %v376
    %v385 = vadd.f32 %v350, %v377
    %v386 = vadd.f32 %v351, %v378
    %387 = vset.pattern.permute.xlu0 5
    %388 = vperm.xlu0 %387, %v76
    %v389 = vpop.permute.xlu0 %388
    %vm390 = vcmp.eq.s32.totalorder %v389, %v204
    %vm391 = vcmp.eq.s32.totalorder %v389, %v205
    %vm392 = vcmp.eq.s32.totalorder %v389, %v206
    %vm393 = vcmp.eq.s32.totalorder %v389, %v207
    %vm394 = vcmp.eq.s32.totalorder %v389, %v208
    %vm395 = vcmp.eq.s32.totalorder %v389, %v209
    %vm396 = vcmp.eq.s32.totalorder %v389, %v210
    %vm397 = vcmp.eq.s32.totalorder %v389, %v211
    %v398 = vsel %vm390, 1, 0
    %v399 = vsel %vm391, 1, 0
    %v400 = vsel %vm392, 1, 0
    %v401 = vsel %vm393, 1, 0
    %v402 = vsel %vm394, 1, 0
    %v403 = vsel %vm395, 1, 0
    %v404 = vsel %vm396, 1, 0
    %v405 = vsel %vm397, 1, 0
    %v406 = vcvt.s32.f32 %v398
    %v407 = vcvt.s32.f32 %v399
    %v408 = vcvt.s32.f32 %v400
    %v409 = vcvt.s32.f32 %v401
    %v410 = vcvt.s32.f32 %v402
    %v411 = vcvt.s32.f32 %v403
    %v412 = vcvt.s32.f32 %v404
    %v413 = vcvt.s32.f32 %v405
    %v414 = vadd.f32 %v379, %v406
    %v415 = vadd.f32 %v380, %v407
    %v416 = vadd.f32 %v381, %v408
    %v417 = vadd.f32 %v382, %v409
    %v418 = vadd.f32 %v383, %v410
    %v419 = vadd.f32 %v384, %v411
    %v420 = vadd.f32 %v385, %v412
    %v421 = vadd.f32 %v386, %v413
    %422 = vset.pattern.permute.xlu0 6
    %423 = vperm.xlu0 %422, %v76
    %v424 = vpop.permute.xlu0 %423
    %vm425 = vcmp.eq.s32.totalorder %v424, %v204
    %vm426 = vcmp.eq.s32.totalorder %v424, %v205
    %vm427 = vcmp.eq.s32.totalorder %v424, %v206
    %vm428 = vcmp.eq.s32.totalorder %v424, %v207
    %vm429 = vcmp.eq.s32.totalorder %v424, %v208
    %vm430 = vcmp.eq.s32.totalorder %v424, %v209
    %vm431 = vcmp.eq.s32.totalorder %v424, %v210
    %vm432 = vcmp.eq.s32.totalorder %v424, %v211
    %v433 = vsel %vm425, 1, 0
    %v434 = vsel %vm426, 1, 0
    %v435 = vsel %vm427, 1, 0
    %v436 = vsel %vm428, 1, 0
    %v437 = vsel %vm429, 1, 0
    %v438 = vsel %vm430, 1, 0
    %v439 = vsel %vm431, 1, 0
    %v440 = vsel %vm432, 1, 0
    %v441 = vcvt.s32.f32 %v433
    %v442 = vcvt.s32.f32 %v434
    %v443 = vcvt.s32.f32 %v435
    %v444 = vcvt.s32.f32 %v436
    %v445 = vcvt.s32.f32 %v437
    %v446 = vcvt.s32.f32 %v438
    %v447 = vcvt.s32.f32 %v439
    %v448 = vcvt.s32.f32 %v440
    %v449 = vadd.f32 %v414, %v441
    %v450 = vadd.f32 %v415, %v442
    %v451 = vadd.f32 %v416, %v443
    %v452 = vadd.f32 %v417, %v444
    %v453 = vadd.f32 %v418, %v445
    %v454 = vadd.f32 %v419, %v446
    %v455 = vadd.f32 %v420, %v447
    %v456 = vadd.f32 %v421, %v448
    %457 = vset.pattern.permute.xlu0 7
    %458 = vperm.xlu0 %457, %v76
    %v459 = vpop.permute.xlu0 %458
    %vm460 = vcmp.eq.s32.totalorder %v459, %v204
    %vm461 = vcmp.eq.s32.totalorder %v459, %v205
    %vm462 = vcmp.eq.s32.totalorder %v459, %v206
    %vm463 = vcmp.eq.s32.totalorder %v459, %v207
    %vm464 = vcmp.eq.s32.totalorder %v459, %v208
    %vm465 = vcmp.eq.s32.totalorder %v459, %v209
    %vm466 = vcmp.eq.s32.totalorder %v459, %v210
    %vm467 = vcmp.eq.s32.totalorder %v459, %v211
    %v468 = vsel %vm460, 1, 0
    %v469 = vsel %vm461, 1, 0
    %v470 = vsel %vm462, 1, 0
    %v471 = vsel %vm463, 1, 0
    %v472 = vsel %vm464, 1, 0
    %v473 = vsel %vm465, 1, 0
    %v474 = vsel %vm466, 1, 0
    %v475 = vsel %vm467, 1, 0
    %v476 = vcvt.s32.f32 %v468
    %v477 = vcvt.s32.f32 %v469
    %v478 = vcvt.s32.f32 %v470
    %v479 = vcvt.s32.f32 %v471
    %v480 = vcvt.s32.f32 %v472
    %v481 = vcvt.s32.f32 %v473
    %v482 = vcvt.s32.f32 %v474
    %v483 = vcvt.s32.f32 %v475
    %v484 = vadd.f32 %v449, %v476
    %v485 = vadd.f32 %v450, %v477
    %v486 = vadd.f32 %v451, %v478
    %v487 = vadd.f32 %v452, %v479
    %v488 = vadd.f32 %v453, %v480
    %v489 = vadd.f32 %v454, %v481
    %v490 = vadd.f32 %v455, %v482
    %v491 = vadd.f32 %v456, %v483
    %vm492 = vcmask 850944
    %v494 = vsel %vm492, %v491, 0
    %496 = vmatprep.subr.mxu0 0.0
    %497 = vmatpush1.msra.mxu0 %v78
    %498 = vmatprep.subr.mxu0 0.0
    %499 = vmatpush1.msra.mxu0 %v79
    %500 = vmatprep.subr.mxu0 0.0
    %501 = vmatpush1.msra.mxu0 %v80
    %502 = vmatprep.subr.mxu0 0.0
    %503 = vmatpush1.msra.mxu0 %v81
    %504 = vmatprep.subr.mxu0 0.0
    %505 = vmatpush1.msra.mxu0 %v82
    %506 = vmatprep.subr.mxu0 0.0
    %507 = vmatpush1.msra.mxu0 %v83
    %508 = vmatprep.subr.mxu0 0.0
    %509 = vmatpush1.msra.mxu0 %v84
    %510 = vmatprep.subr.mxu0 0.0
    %511 = vmatpush1.msra.mxu0 %v85
    %512 = vmatprep.subr.mxu0 0.0
    %513 = vmatpush1.msra.mxu0 %v86
    %514 = vmatprep.subr.mxu0 0.0
    %515 = vmatpush1.msra.mxu0 %v87
    %516 = vmatprep.subr.mxu0 0.0
    %517 = vmatpush1.msra.mxu0 %v88
    %518 = vmatprep.subr.mxu0 0.0
    %519 = vmatpush1.msra.mxu0 %v89
    %520 = vmatprep.subr.mxu0 0.0
    %521 = vmatpush1.msra.mxu0 %v90
    %522 = vmatprep.subr.mxu0 0.0
    %523 = vmatpush1.msra.mxu0 %v91
    %524 = vmatprep.subr.mxu0 0.0
    %525 = vmatpush1.msra.mxu0 %v92
    %526 = vmatprep.subr.mxu0 0.0
    %527 = vmatpush1.msra.mxu0 %v93
    %528 = vmatprep.subr.mxu0 0.0
    %529 = vmatpush1.msra.mxu0 %v94
    %530 = vmatprep.subr.mxu0 0.0
    %531 = vmatpush1.msra.mxu0 %v95
    %532 = vmatprep.subr.mxu0 0.0
    %533 = vmatpush1.msra.mxu0 %v96
    %534 = vmatprep.subr.mxu0 0.0
    %535 = vmatpush1.msra.mxu0 %v97
    %536 = vmatprep.subr.mxu0 0.0
    %537 = vmatpush1.msra.mxu0 %v98
    %538 = vmatprep.subr.mxu0 0.0
    %539 = vmatpush1.msra.mxu0 %v99
    %540 = vmatprep.subr.mxu0 0.0
    %541 = vmatpush1.msra.mxu0 %v100
    %542 = vmatprep.subr.mxu0 0.0
    %543 = vmatpush1.msra.mxu0 %v101
    %544 = vmatprep.subr.mxu0 0.0
    %545 = vmatpush1.msra.mxu0 %v102
    %546 = vmatprep.subr.mxu0 0.0
    %547 = vmatpush1.msra.mxu0 %v103
    %548 = vmatprep.subr.mxu0 0.0
    %549 = vmatpush1.msra.mxu0 %v104
    %550 = vmatprep.subr.mxu0 0.0
    %551 = vmatpush1.msra.mxu0 %v105
    %552 = vmatprep.subr.mxu0 0.0
    %553 = vmatpush1.msra.mxu0 %v106
    %554 = vmatprep.subr.mxu0 0.0
    %555 = vmatpush1.msra.mxu0 %v107
    %556 = vmatprep.subr.mxu0 0.0
    %557 = vmatpush1.msra.mxu0 %v108
    %558 = vmatprep.subr.mxu0 0.0
    %559 = vmatpush1.msra.mxu0 %v109
    %560 = vmatprep.mubr.f32.mxu0 %v485
    %561 = vmatmul.mubr.f32.gmra.mrb[0].mxu0 %v484
    %v562 = vpop.f32.mrb[0].mxu0
    %v563 = vadd.f32 0.0, %v562
    %v564 = vpop.f32.mrb[0].mxu0
    %565 = vdwg.mxu0
    %566 = vmatprep.subr.mxu0 0.0
    %567 = vmatpush1.msra.mxu0 %v110
    %568 = vmatprep.subr.mxu0 0.0
    %569 = vmatpush1.msra.mxu0 %v111
    %570 = vmatprep.subr.mxu0 0.0
    %571 = vmatpush1.msra.mxu0 %v112
    %572 = vmatprep.subr.mxu0 0.0
    %573 = vmatpush1.msra.mxu0 %v113
    %574 = vmatprep.subr.mxu0 0.0
    %575 = vmatpush1.msra.mxu0 %v114
    %576 = vmatprep.subr.mxu0 0.0
    %577 = vmatpush1.msra.mxu0 %v115
    %578 = vmatprep.subr.mxu0 0.0
    %579 = vmatpush1.msra.mxu0 %v116
    %580 = vmatprep.subr.mxu0 0.0
    %581 = vmatpush1.msra.mxu0 %v117
    %582 = vmatprep.subr.mxu0 0.0
    %583 = vmatpush1.msra.mxu0 %v118
    %584 = vmatprep.subr.mxu0 0.0
    %585 = vmatpush1.msra.mxu0 %v119
    %586 = vmatprep.subr.mxu0 0.0
    %587 = vmatpush1.msra.mxu0 %v120
    %588 = vmatprep.subr.mxu0 0.0
    %589 = vmatpush1.msra.mxu0 %v121
    %590 = vmatprep.subr.mxu0 0.0
    %591 = vmatpush1.msra.mxu0 %v122
    %592 = vmatprep.subr.mxu0 0.0
    %593 = vmatpush1.msra.mxu0 %v123
    %594 = vmatprep.subr.mxu0 0.0
    %595 = vmatpush1.msra.mxu0 %v124
    %596 = vmatprep.subr.mxu0 0.0
    %597 = vmatpush1.msra.mxu0 %v125
    %598 = vmatprep.subr.mxu0 0.0
    %599 = vmatpush1.msra.mxu0 %v126
    %600 = vmatprep.subr.mxu0 0.0
    %601 = vmatpush1.msra.mxu0 %v127
    %602 = vmatprep.subr.mxu0 0.0
    %603 = vmatpush1.msra.mxu0 %v128
    %604 = vmatprep.subr.mxu0 0.0
    %605 = vmatpush1.msra.mxu0 %v129
    %606 = vmatprep.subr.mxu0 0.0
    %607 = vmatpush1.msra.mxu0 %v130
    %608 = vmatprep.subr.mxu0 0.0
    %609 = vmatpush1.msra.mxu0 %v131
    %610 = vmatprep.subr.mxu0 0.0
    %611 = vmatpush1.msra.mxu0 %v132
    %612 = vmatprep.subr.mxu0 0.0
    %613 = vmatpush1.msra.mxu0 %v133
    %614 = vmatprep.subr.mxu0 0.0
    %615 = vmatpush1.msra.mxu0 %v134
    %616 = vmatprep.subr.mxu0 0.0
    %617 = vmatpush1.msra.mxu0 %v135
    %618 = vmatprep.subr.mxu0 0.0
    %619 = vmatpush1.msra.mxu0 %v136
    %620 = vmatprep.subr.mxu0 0.0
    %621 = vmatpush1.msra.mxu0 %v137
    %622 = vmatprep.subr.mxu0 0.0
    %623 = vmatpush1.msra.mxu0 %v138
    %624 = vmatprep.subr.mxu0 0.0
    %625 = vmatpush1.msra.mxu0 %v139
    %626 = vmatprep.subr.mxu0 0.0
    %627 = vmatpush1.msra.mxu0 %v140
    %628 = vmatprep.subr.mxu0 0.0
    %629 = vmatpush1.msra.mxu0 %v141
    %630 = vmatprep.mubr.f32.mxu0 %v487
    %631 = vmatmul.mubr.f32.gmra.mrb[0].mxu0 %v486
    %v632 = vpop.f32.mrb[0].mxu0
    %v633 = vadd.f32 %v563, %v632
    %v634 = vpop.f32.mrb[0].mxu0
    %635 = vdwg.mxu0
    %636 = vmatprep.subr.mxu0 0.0
    %637 = vmatpush1.msra.mxu0 %v142
    %638 = vmatprep.subr.mxu0 0.0
    %639 = vmatpush1.msra.mxu0 %v143
    %640 = vmatprep.subr.mxu0 0.0
    %641 = vmatpush1.msra.mxu0 %v144
    %642 = vmatprep.subr.mxu0 0.0
    %643 = vmatpush1.msra.mxu0 %v145
    %644 = vmatprep.subr.mxu0 0.0
    %645 = vmatpush1.msra.mxu0 %v146
    %646 = vmatprep.subr.mxu0 0.0
    %647 = vmatpush1.msra.mxu0 %v147
    %648 = vmatprep.subr.mxu0 0.0
    %649 = vmatpush1.msra.mxu0 %v148
    %650 = vmatprep.subr.mxu0 0.0
    %651 = vmatpush1.msra.mxu0 %v149
    %652 = vmatprep.subr.mxu0 0.0
    %653 = vmatpush1.msra.mxu0 %v150
    %654 = vmatprep.subr.mxu0 0.0
    %655 = vmatpush1.msra.mxu0 %v151
    %656 = vmatprep.subr.mxu0 0.0
    %657 = vmatpush1.msra.mxu0 %v152
    %658 = vmatprep.subr.mxu0 0.0
    %659 = vmatpush1.msra.mxu0 %v153
    %660 = vmatprep.subr.mxu0 0.0
    %661 = vmatpush1.msra.mxu0 %v154
    %662 = vmatprep.subr.mxu0 0.0
    %663 = vmatpush1.msra.mxu0 %v155
    %664 = vmatprep.subr.mxu0 0.0
    %665 = vmatpush1.msra.mxu0 %v156
    %666 = vmatprep.subr.mxu0 0.0
    %667 = vmatpush1.msra.mxu0 %v157
    %668 = vmatprep.subr.mxu0 0.0
    %669 = vmatpush1.msra.mxu0 %v158
    %670 = vmatprep.subr.mxu0 0.0
    %671 = vmatpush1.msra.mxu0 %v159
    %672 = vmatprep.subr.mxu0 0.0
    %673 = vmatpush1.msra.mxu0 %v160
    %674 = vmatprep.subr.mxu0 0.0
    %675 = vmatpush1.msra.mxu0 %v161
    %676 = vmatprep.subr.mxu0 0.0
    %677 = vmatpush1.msra.mxu0 %v162
    %678 = vmatprep.subr.mxu0 0.0
    %679 = vmatpush1.msra.mxu0 %v163
    %680 = vmatprep.subr.mxu0 0.0
    %681 = vmatpush1.msra.mxu0 %v164
    %682 = vmatprep.subr.mxu0 0.0
    %683 = vmatpush1.msra.mxu0 %v165
    %684 = vmatprep.subr.mxu0 0.0
    %685 = vmatpush1.msra.mxu0 %v166
    %686 = vmatprep.subr.mxu0 0.0
    %687 = vmatpush1.msra.mxu0 %v167
    %688 = vmatprep.subr.mxu0 0.0
    %689 = vmatpush1.msra.mxu0 %v168
    %690 = vmatprep.subr.mxu0 0.0
    %691 = vmatpush1.msra.mxu0 %v169
    %692 = vmatprep.subr.mxu0 0.0
    %693 = vmatpush1.msra.mxu0 %v170
    %694 = vmatprep.subr.mxu0 0.0
    %695 = vmatpush1.msra.mxu0 %v171
    %696 = vmatprep.subr.mxu0 0.0
    %697 = vmatpush1.msra.mxu0 %v172
    %698 = vmatprep.subr.mxu0 0.0
    %699 = vmatpush1.msra.mxu0 %v173
    %700 = vmatprep.mubr.f32.mxu0 %v489
    %701 = vmatmul.mubr.f32.gmra.mrb[0].mxu0 %v488
    %v702 = vpop.f32.mrb[0].mxu0
    %v703 = vadd.f32 %v633, %v702
    %v704 = vpop.f32.mrb[0].mxu0
    %705 = vdwg.mxu0
    %706 = vmatprep.subr.mxu0 0.0
    %707 = vmatpush1.msra.mxu0 %v174
    %708 = vmatprep.subr.mxu0 0.0
    %709 = vmatpush1.msra.mxu0 %v175
    %710 = vmatprep.subr.mxu0 0.0
    %711 = vmatpush1.msra.mxu0 %v176
    %712 = vmatprep.subr.mxu0 0.0
    %713 = vmatpush1.msra.mxu0 %v177
    %714 = vmatprep.subr.mxu0 0.0
    %715 = vmatpush1.msra.mxu0 %v178
    %716 = vmatprep.subr.mxu0 0.0
    %717 = vmatpush1.msra.mxu0 %v179
    %718 = vmatprep.subr.mxu0 0.0
    %719 = vmatpush1.msra.mxu0 %v180
    %720 = vmatprep.subr.mxu0 0.0
    %721 = vmatpush1.msra.mxu0 %v181
    %722 = vmatprep.subr.mxu0 0.0
    %723 = vmatpush1.msra.mxu0 %v182
    %724 = vmatprep.subr.mxu0 0.0
    %725 = vmatpush1.msra.mxu0 %v183
    %726 = vmatprep.subr.mxu0 0.0
    %727 = vmatpush1.msra.mxu0 %v184
    %728 = vmatprep.subr.mxu0 0.0
    %729 = vmatpush1.msra.mxu0 %v185
    %730 = vmatprep.subr.mxu0 0.0
    %731 = vmatpush1.msra.mxu0 %v186
    %732 = vmatprep.subr.mxu0 0.0
    %733 = vmatpush1.msra.mxu0 %v187
    %734 = vmatprep.subr.mxu0 0.0
    %735 = vmatpush1.msra.mxu0 %v188
    %736 = vmatprep.subr.mxu0 0.0
    %737 = vmatpush1.msra.mxu0 %v189
    %738 = vmatprep.subr.mxu0 0.0
    %739 = vmatpush1.msra.mxu0 %v190
    %740 = vmatprep.subr.mxu0 0.0
    %741 = vmatpush1.msra.mxu0 %v191
    %742 = vmatprep.subr.mxu0 0.0
    %743 = vmatpush1.msra.mxu0 %v192
    %744 = vmatprep.subr.mxu0 0.0
    %745 = vmatpush1.msra.mxu0 %v193
    %746 = vmatprep.subr.mxu0 0.0
    %747 = vmatpush1.msra.mxu0 %v194
    %748 = vmatprep.subr.mxu0 0.0
    %749 = vmatpush1.msra.mxu0 %v195
    %750 = vmatprep.subr.mxu0 0.0
    %751 = vmatpush1.msra.mxu0 %v196
    %752 = vmatprep.subr.mxu0 0.0
    %753 = vmatpush1.msra.mxu0 %v197
    %754 = vmatprep.subr.mxu0 0.0
    %755 = vmatpush1.msra.mxu0 %v198
    %756 = vmatprep.subr.mxu0 0.0
    %757 = vmatpush1.msra.mxu0 %v199
    %758 = vmatprep.subr.mxu0 0.0
    %759 = vmatpush1.msra.mxu0 %v200
    %760 = vmatprep.subr.mxu0 0.0
    %761 = vmatpush1.msra.mxu0 %v201
    %762 = vmatprep.subr.mxu0 0.0
    %763 = vmatpush1.msra.mxu0 %v202
    %764 = vmatprep.subr.mxu0 0.0
    %765 = vmatpush1.msra.mxu0 0.0
    %766 = vmatprep.subr.mxu0 0.0
    %767 = vmatpush1.msra.mxu0 0.0
    %768 = vmatprep.subr.mxu0 0.0
    %769 = vmatpush1.msra.mxu0 0.0
    %770 = vmatprep.mubr.f32.mxu0 %v494
    %771 = vmatmul.mubr.f32.gmra.mrb[0].mxu0 %v490
    %v772 = vpop.f32.mrb[0].mxu0
    %v773 = vadd.f32 %v703, %v772
    %v774 = vpop.f32.mrb[0].mxu0
    %775 = vdwg.mxu0
    %v776 = vmul.f32 %v773, 0.125
    %v777 = vld [vmem:[#allocation4] sm:$0xff]
    %v778 = vld [vmem:[#allocation4 + $0x8] sm:$0xff]
    %v779 = vld [vmem:[#allocation4 + $0x10] sm:$0xff]
    %v780 = vld [vmem:[#allocation4 + $0x18] sm:$0xff]
    %v781 = vld [vmem:[#allocation4 + $0x20] sm:$0xff]
    %v782 = vld [vmem:[#allocation4 + $0x28] sm:$0xff]
    %v783 = vld [vmem:[#allocation4 + $0x30] sm:$0xff]
    %v784 = vld [vmem:[#allocation4 + $0x38] sm:$0xff]
    %v785 = vld [vmem:[%s4] sm:$0x1]
    %787 = vset.pattern.permute.xlu0 0
    %788 = vperm.xlu0 %787, %v77
    %v789 = vpop.permute.xlu0 %788
    %v791 = vlaneseq
    %v792 = vshrl.u32 %v791, 7
    %v793 = vsub.s32 0, %v792
    %v794 = vrot.slane %v785, %v793
    %v795 = vmul.f32 %v789, %v794
    %vm796 = vcmask 523264
    %v798 = vsel %vm796, %v776, 0
    %800 = vmatprep.subr.mxu0 0.0
    %801 = vmatpush1.msra.mxu0 %v777
    %802 = vmatprep.subr.mxu0 0.0
    %803 = vmatpush1.msra.mxu0 %v778
    %804 = vmatprep.subr.mxu0 0.0
    %805 = vmatpush1.msra.mxu0 %v779
    %806 = vmatprep.subr.mxu0 0.0
    %807 = vmatpush1.msra.mxu0 %v780
    %808 = vmatprep.subr.mxu0 0.0
    %809 = vmatpush1.msra.mxu0 %v781
    %810 = vmatprep.subr.mxu0 0.0
    %811 = vmatpush1.msra.mxu0 %v782
    %812 = vmatprep.subr.mxu0 0.0
    %813 = vmatpush1.msra.mxu0 %v783
    %814 = vmatprep.subr.mxu0 0.0
    %815 = vmatpush1.msra.mxu0 %v784
    %816 = vmatprep.subr.mxu0 0.0
    %817 = vmatpush1.msra.mxu0 0.0
    %818 = vmatprep.subr.mxu0 0.0
    %819 = vmatpush1.msra.mxu0 0.0
    %820 = vmatprep.subr.mxu0 0.0
    %821 = vmatpush1.msra.mxu0 0.0
    %822 = vmatprep.subr.mxu0 0.0
    %823 = vmatpush1.msra.mxu0 0.0
    %824 = vmatprep.subr.mxu0 0.0
    %825 = vmatpush1.msra.mxu0 0.0
    %826 = vmatprep.subr.mxu0 0.0
    %827 = vmatpush1.msra.mxu0 0.0
    %828 = vmatprep.subr.mxu0 0.0
    %829 = vmatpush1.msra.mxu0 0.0
    %830 = vmatprep.subr.mxu0 0.0
    %831 = vmatpush1.msra.mxu0 0.0
    %832 = vmatprep.subr.mxu0 0.0
    %833 = vmatpush1.msra.mxu0 0.0
    %834 = vmatprep.subr.mxu0 0.0
    %835 = vmatpush1.msra.mxu0 0.0
    %836 = vmatprep.subr.mxu0 0.0
    %837 = vmatpush1.msra.mxu0 0.0
    %838 = vmatprep.subr.mxu0 0.0
    %839 = vmatpush1.msra.mxu0 0.0
    %840 = vmatprep.subr.mxu0 0.0
    %841 = vmatpush1.msra.mxu0 0.0
    %842 = vmatprep.subr.mxu0 0.0
    %843 = vmatpush1.msra.mxu0 0.0
    %844 = vmatprep.subr.mxu0 0.0
    %845 = vmatpush1.msra.mxu0 0.0
    %846 = vmatprep.subr.mxu0 0.0
    %847 = vmatpush1.msra.mxu0 0.0
    %848 = vmatprep.subr.mxu0 0.0
    %849 = vmatpush1.msra.mxu0 0.0
    %850 = vmatprep.subr.mxu0 0.0
    %851 = vmatpush1.msra.mxu0 0.0
    %852 = vmatprep.subr.mxu0 0.0
    %853 = vmatpush1.msra.mxu0 0.0
    %854 = vmatprep.subr.mxu0 0.0
    %855 = vmatpush1.msra.mxu0 0.0
    %856 = vmatprep.subr.mxu0 0.0
    %857 = vmatpush1.msra.mxu0 0.0
    %858 = vmatprep.subr.mxu0 0.0
    %859 = vmatpush1.msra.mxu0 0.0
    %860 = vmatprep.subr.mxu0 0.0
    %861 = vmatpush1.msra.mxu0 0.0
    %862 = vmatprep.subr.mxu0 0.0
    %863 = vmatpush1.msra.mxu0 0.0
    %864 = vmatprep.mubr.f32.mxu0 0.0
    %865 = vmatmul.mubr.f32.gmra.mrb[0].mxu0 %v798
    %v866 = vpop.f32.mrb[0].mxu0
    %v867 = vadd.f32 %v795, %v866
    %v868 = vpop.f32.mrb[0].mxu0
    %869 = vdwg.mxu0
    %v870 = vld [vmem:[%s4 + $0x1] sm:$0x1]
    %871 = vset.pattern.permute.xlu0 1
    %872 = vperm.xlu0 %871, %v77
    %v873 = vpop.permute.xlu0 %872
    %v875 = vlaneseq
    %v876 = vshrl.u32 %v875, 7
    %v877 = vsub.s32 0, %v876
    %v878 = vrot.slane %v870, %v877
    %v879 = vmul.f32 %v873, %v878
    %v880 = vadd.f32 %v867, %v879
    %v881 = vld [vmem:[%s5] sm:$0x1]
    %v883 = vlaneseq
    %v884 = vshrl.u32 %v883, 7
    %v885 = vsub.s32 0, %v884
    %v886 = vrot.slane %v881, %v885
    %v888 = vadd.f32 %v880, %v886
    %v889 = vmax.f32 %v888, 0.0
    %v890 = vld [vmem:[#allocation6] sm:$0xff]
    %v891 = vld [vmem:[#allocation6 + $0x8] sm:$0xff]
    %v892 = vld [vmem:[#allocation6 + $0x10] sm:$0xff]
    %v893 = vld [vmem:[#allocation6 + $0x18] sm:$0xff]
    %v894 = vld [vmem:[#allocation6 + $0x20] sm:$0xff]
    %v895 = vld [vmem:[#allocation6 + $0x28] sm:$0xff]
    %v896 = vld [vmem:[#allocation6 + $0x30] sm:$0xff]
    %v897 = vld [vmem:[#allocation6 + $0x38] sm:$0xff]
    %v898 = vld [vmem:[#allocation6 + $0x40] sm:$0xff]
    %v899 = vld [vmem:[#allocation6 + $0x48] sm:$0xff]
    %v900 = vld [vmem:[#allocation6 + $0x50] sm:$0xff]
    %v901 = vld [vmem:[#allocation6 + $0x58] sm:$0xff]
    %v902 = vld [vmem:[#allocation6 + $0x60] sm:$0xff]
    %v903 = vld [vmem:[#allocation6 + $0x68] sm:$0xff]
    %v904 = vld [vmem:[#allocation6 + $0x70] sm:$0xff]
    %v905 = vld [vmem:[#allocation6 + $0x78] sm:$0xff]
    %v906 = vld [vmem:[%s7] sm:$0x1]
    %v908 = vlaneseq
    %v909 = vshrl.u32 %v908, 7
    %v910 = vsub.s32 0, %v909
    %v911 = vrot.slane %v906, %v910
    %913 = vmatprep.subr.mxu0 0.0
    %914 = vmatpush1.msra.mxu0 %v890
    %915 = vmatprep.subr.mxu0 0.0
    %916 = vmatpush1.msra.mxu0 %v891
    %917 = vmatprep.subr.mxu0 0.0
    %918 = vmatpush1.msra.mxu0 %v892
    %919 = vmatprep.subr.mxu0 0.0
    %920 = vmatpush1.msra.mxu0 %v893
    %921 = vmatprep.subr.mxu0 0.0
    %922 = vmatpush1.msra.mxu0 %v894
    %923 = vmatprep.subr.mxu0 0.0
    %924 = vmatpush1.msra.mxu0 %v895
    %925 = vmatprep.subr.mxu0 0.0
    %926 = vmatpush1.msra.mxu0 %v896
    %927 = vmatprep.subr.mxu0 0.0
    %928 = vmatpush1.msra.mxu0 %v897
    %929 = vmatprep.subr.mxu0 0.0
    %930 = vmatpush1.msra.mxu0 %v898
    %931 = vmatprep.subr.mxu0 0.0
    %932 = vmatpush1.msra.mxu0 %v899
    %933 = vmatprep.subr.mxu0 0.0
    %934 = vmatpush1.msra.mxu0 %v900
    %935 = vmatprep.subr.mxu0 0.0
    %936 = vmatpush1.msra.mxu0 %v901
    %937 = vmatprep.subr.mxu0 0.0
    %938 = vmatpush1.msra.mxu0 %v902
    %939 = vmatprep.subr.mxu0 0.0
    %940 = vmatpush1.msra.mxu0 %v903
    %941 = vmatprep.subr.mxu0 0.0
    %942 = vmatpush1.msra.mxu0 %v904
    %943 = vmatprep.subr.mxu0 0.0
    %944 = vmatpush1.msra.mxu0 %v905
    %945 = vmatprep.subr.mxu0 0.0
    %946 = vmatpush1.msra.mxu0 0.0
    %947 = vmatprep.subr.mxu0 0.0
    %948 = vmatpush1.msra.mxu0 0.0
    %949 = vmatprep.subr.mxu0 0.0
    %950 = vmatpush1.msra.mxu0 0.0
    %951 = vmatprep.subr.mxu0 0.0
    %952 = vmatpush1.msra.mxu0 0.0
    %953 = vmatprep.subr.mxu0 0.0
    %954 = vmatpush1.msra.mxu0 0.0
    %955 = vmatprep.subr.mxu0 0.0
    %956 = vmatpush1.msra.mxu0 0.0
    %957 = vmatprep.subr.mxu0 0.0
    %958 = vmatpush1.msra.mxu0 0.0
    %959 = vmatprep.subr.mxu0 0.0
    %960 = vmatpush1.msra.mxu0 0.0
    %961 = vmatprep.subr.mxu0 0.0
    %962 = vmatpush1.msra.mxu0 0.0
    %963 = vmatprep.subr.mxu0 0.0
    %964 = vmatpush1.msra.mxu0 0.0
    %965 = vmatprep.subr.mxu0 0.0
    %966 = vmatpush1.msra.mxu0 0.0
    %967 = vmatprep.subr.mxu0 0.0
    %968 = vmatpush1.msra.mxu0 0.0
    %969 = vmatprep.subr.mxu0 0.0
    %970 = vmatpush1.msra.mxu0 0.0
    %971 = vmatprep.subr.mxu0 0.0
    %972 = vmatpush1.msra.mxu0 0.0
    %973 = vmatprep.subr.mxu0 0.0
    %974 = vmatpush1.msra.mxu0 0.0
    %975 = vmatprep.subr.mxu0 0.0
    %976 = vmatpush1.msra.mxu0 0.0
    %977 = vmatprep.mubr.f32.mxu0 0.0
    %978 = vmatmul.mubr.f32.gmra.mrb[0].mxu0 %v889
    %v979 = vpop.f32.mrb[0].mxu0
    %v980 = vadd.f32 %v911, %v979
    %v981 = vpop.f32.mrb[0].mxu0
    %982 = vdwg.mxu0
    %v983 = vmax.f32 %v980, 0.0
    %v984 = vld [vmem:[%s8] sm:$0xff]
    %v985 = vld [vmem:[%s8 + $0x8] sm:$0xff]
    %v986 = vld [vmem:[%s8 + $0x10] sm:$0xff]
    %v987 = vld [vmem:[%s8 + $0x18] sm:$0xff]
    %v988 = vld [vmem:[%s8 + $0x20] sm:$0xff]
    %v989 = vld [vmem:[%s8 + $0x28] sm:$0xff]
    %v990 = vld [vmem:[%s8 + $0x30] sm:$0xff]
    %v991 = vld [vmem:[%s8 + $0x38] sm:$0xff]
    %v992 = vld [vmem:[%s9] sm:$0x1]
    %v994 = vlaneseq
    %v995 = vshrl.u32 %v994, 7
    %v996 = vsub.s32 0, %v995
    %v997 = vrot.slane %v992, %v996
    %v1000 = vsel %vm796, %v983, 0
    %1002 = vmatprep.subr.mxu0 0.0
    %1003 = vmatpush1.msra.mxu0 %v984
    %1004 = vmatprep.subr.mxu0 0.0
    %1005 = vmatpush1.msra.mxu0 %v985
    %1006 = vmatprep.subr.mxu0 0.0
    %1007 = vmatpush1.msra.mxu0 %v986
    %1008 = vmatprep.subr.mxu0 0.0
    %1009 = vmatpush1.msra.mxu0 %v987
    %1010 = vmatprep.subr.mxu0 0.0
    %1011 = vmatpush1.msra.mxu0 %v988
    %1012 = vmatprep.subr.mxu0 0.0
    %1013 = vmatpush1.msra.mxu0 %v989
    %1014 = vmatprep.subr.mxu0 0.0
    %1015 = vmatpush1.msra.mxu0 %v990
    %1016 = vmatprep.subr.mxu0 0.0
    %1017 = vmatpush1.msra.mxu0 %v991
    %1018 = vmatprep.subr.mxu0 0.0
    %1019 = vmatpush1.msra.mxu0 0.0
    %1020 = vmatprep.subr.mxu0 0.0
    %1021 = vmatpush1.msra.mxu0 0.0
    %1022 = vmatprep.subr.mxu0 0.0
    %1023 = vmatpush1.msra.mxu0 0.0
    %1024 = vmatprep.subr.mxu0 0.0
    %1025 = vmatpush1.msra.mxu0 0.0
    %1026 = vmatprep.subr.mxu0 0.0
    %1027 = vmatpush1.msra.mxu0 0.0
    %1028 = vmatprep.subr.mxu0 0.0
    %1029 = vmatpush1.msra.mxu0 0.0
    %1030 = vmatprep.subr.mxu0 0.0
    %1031 = vmatpush1.msra.mxu0 0.0
    %1032 = vmatprep.subr.mxu0 0.0
    %1033 = vmatpush1.msra.mxu0 0.0
    %1034 = vmatprep.subr.mxu0 0.0
    %1035 = vmatpush1.msra.mxu0 0.0
    %1036 = vmatprep.subr.mxu0 0.0
    %1037 = vmatpush1.msra.mxu0 0.0
    %1038 = vmatprep.subr.mxu0 0.0
    %1039 = vmatpush1.msra.mxu0 0.0
    %1040 = vmatprep.subr.mxu0 0.0
    %1041 = vmatpush1.msra.mxu0 0.0
    %1042 = vmatprep.subr.mxu0 0.0
    %1043 = vmatpush1.msra.mxu0 0.0
    %1044 = vmatprep.subr.mxu0 0.0
    %1045 = vmatpush1.msra.mxu0 0.0
    %1046 = vmatprep.subr.mxu0 0.0
    %1047 = vmatpush1.msra.mxu0 0.0
    %1048 = vmatprep.subr.mxu0 0.0
    %1049 = vmatpush1.msra.mxu0 0.0
    %1050 = vmatprep.subr.mxu0 0.0
    %1051 = vmatpush1.msra.mxu0 0.0
    %1052 = vmatprep.subr.mxu0 0.0
    %1053 = vmatpush1.msra.mxu0 0.0
    %1054 = vmatprep.subr.mxu0 0.0
    %1055 = vmatpush1.msra.mxu0 0.0
    %1056 = vmatprep.subr.mxu0 0.0
    %1057 = vmatpush1.msra.mxu0 0.0
    %1058 = vmatprep.subr.mxu0 0.0
    %1059 = vmatpush1.msra.mxu0 0.0
    %1060 = vmatprep.subr.mxu0 0.0
    %1061 = vmatpush1.msra.mxu0 0.0
    %1062 = vmatprep.subr.mxu0 0.0
    %1063 = vmatpush1.msra.mxu0 0.0
    %1064 = vmatprep.subr.mxu0 0.0
    %1065 = vmatpush1.msra.mxu0 0.0
    %1066 = vmatprep.mubr.f32.mxu0 0.0
    %1067 = vmatmul.mubr.f32.gmra.mrb[0].mxu0 %v1000
    %v1068 = vpop.f32.mrb[0].mxu0
    %v1069 = vadd.f32 %v997, %v1068
    %v1070 = vpop.f32.mrb[0].mxu0
    %1071 = vdwg.mxu0
    %vm1072 = vcmask 261120
    %1073 = vst.msk [vmem:[%s10] sm:$0xff] %vm1072, %v1069
    // Predicated region
    $region54: #{_lambda_.1} parent=1 // pred_check
      _
    $region55: #{_lambda_.1} parent=1 // pred_check_branch
      %1075 = sbr.rel (0) target = $region57
    $region56: #{_lambda_.1} parent=1 // pred_region
      _
    $region57: #{_lambda_.1} parent=1 // pred_fallthru
      _
    // Predicated region
    $region58: #{_lambda_.1} parent=1 // pred_check
      _
    $region59: #{_lambda_.1} parent=1 // pred_check_branch
      %1077 = sbr.rel (0) target = $region61
    $region60: #{_lambda_.1} parent=1 // pred_region
      _
    $region61: #{_lambda_.1} parent=1 // pred_fallthru
      _
    %1078 = vsyncpa [#allocation3], 1
    %1079 = vsyncpa [#allocation5], 1

</llo_original>
